<compile_context>
chip_gen: v7x
topology: tpu7x:2x2x1
jax: 0.10.0
libtpu: 0.0.40
codegen_flags: <defaults>
</compile_context>

<pallas_src>
import math

import jax
import jax.numpy as jnp
from jax.experimental import pallas as pl
from jax.experimental.pallas import tpu as pltpu


_LN_EPS = 1e-5


def _round_up(x, m):
    return ((x + m - 1) // m) * m


def _pick_tile(total, target, align):
    """Largest multiple of `align` that divides `total` and is <= target, else `total`."""
    if total <= target:
        return total
    t = (target // align) * align
    while t >= align:
        if total % t == 0:
            return t
        t -= align
    return total


def _gelu_exact(x):
    """PyTorch nn.GELU() (erf formulation), select-free.

    Uses erf's odd symmetry:  gelu(x) = relu(x) - 0.5*|x| * erfc(|x|/sqrt(2)),
    with erfc(|z|) from the Abramowitz & Stegun 7.1.26 rational approximation
    (|err| <= 1.5e-7).  The divide is offloaded to the EUP.
    """
    a1 = 0.254829592
    a2 = -0.284496736
    a3 = 1.421413741
    a4 = -1.453152027
    a5 = 1.061405429
    p = 0.3275911
    az = jnp.abs(x) * 0.7071067811865476            # |x| / sqrt(2)
    t = pl.reciprocal(1.0 + p * az, approx=True)    # EUP slot (vrcp)
    poly = ((((a5 * t + a4) * t + a3) * t + a2) * t + a1) * t
    erfc_az = poly * jnp.exp(-az * az)              # erfc(|z|) = 1 - erf(|z|)
    return jnp.maximum(x, 0.0) - 0.5 * jnp.abs(x) * erfc_az


def _ffn_kernel(x_ref, gamma_ref, beta_ref, w1_ref, b1_ref, w2_ref, b2_ref,
                o_ref, y_scr, acc_scr):
    """One (row-tile, hidden-tile) step of fused LayerNorm + FFN.

    x_ref:     (tm, dim)  f32      row tile (constant across hidden axis)
    gamma_ref: (1, dim)   f32      LayerNorm weight
    beta_ref:  (1, dim)   f32      LayerNorm bias
    w1_ref:    (dim, tn)  bf16     first Linear weight slice  (in, out) layout
    b1_ref:    (1, tn)    f32      first Linear bias slice
    w2_ref:    (tn, dim)  bf16     second Linear weight slice (in, out) layout
    b2_ref:    (1, dim)   f32      second Linear bias
    o_ref:     (tm, dim)  f32      output tile (same block across hidden axis)
    y_scr:     (tm, dim)  bf16     normalized rows, reused across hidden tiles
    acc_scr:   (tm, dim)  f32      output accumulator
    """
    j = pl.program_id(1)

    @pl.when(j == 0)
    def _():
        # LayerNorm in f32; one-pass statistics (independent XLU reductions).
        x = x_ref[...].astype(jnp.float32)
        inv_d = jnp.float32(1.0 / x_ref.shape[-1])
        s1 = jnp.sum(x, axis=-1, keepdims=True)
        s2 = jnp.sum(x * x, axis=-1, keepdims=True)
        mean = s1 * inv_d
        var = jnp.maximum(s2 * inv_d - mean * mean, 0.0)
        y = (x - mean) * jax.lax.rsqrt(var + _LN_EPS)
        y = y * gamma_ref[...] + beta_ref[...]
        y_scr[...] = y.astype(y_scr.dtype)          # bf16 for the MXU
        acc_scr[...] = jnp.zeros_like(acc_scr)

    # Linear(dim -> tn hidden slice) + exact GELU.  bf16 operands, f32 acc.
    h = jnp.dot(y_scr[...], w1_ref[...], preferred_element_type=jnp.float32)
    h = _gelu_exact(h + b1_ref[...])

    # Partial Linear(tn -> dim) accumulated into the resident f32 scratch.
    acc_scr[...] += jnp.dot(h.astype(w2_ref.dtype), w2_ref[...],
                            preferred_element_type=jnp.float32)

    @pl.when(j == pl.num_programs(1) - 1)
    def _():
        o_ref[...] = (acc_scr[...] + b2_ref[...]).astype(o_ref.dtype)


def feed_forward(x, params, *, block_rows=256, block_hidden=512):
    """FeedForward forward pass.

    x:      (..., dim) float32
    params: dict with
        ln_gamma (dim,), ln_beta (dim,),
        w1 (dim, hidden), b1 (hidden,),
        w2 (hidden, dim), b2 (dim,)
    (w1/w2 are the PyTorch Linear weights transposed to (in, out) layout.)
    """
    orig_shape = x.shape
    dim = orig_shape[-1]
    hidden = params["w1"].shape[1]
    m = math.prod(orig_shape[:-1]) if len(orig_shape) > 1 else 1

    x2 = x.reshape(m, dim).astype(jnp.float32)

    # Row tile: multiple of 8 sublanes, default 256 for HBM streaming / 256-wide MXU.
    tm = min(_round_up(block_rows, 8), _round_up(m, 8))
    m_pad = _round_up(m, tm)
    if m_pad != m:
        x2 = jnp.pad(x2, ((0, m_pad - m), (0, 0)))

    # Hidden tile: 128-aligned divisor of hidden (bounds weight VMEM + intermediates).
    tn = _pick_tile(hidden, block_hidden, 128)

    gamma = params["ln_gamma"].reshape(1, dim).astype(jnp.float32)
    beta = params["ln_beta"].reshape(1, dim).astype(jnp.float32)
    w1 = params["w1"].astype(jnp.bfloat16)          # bf16 MXU operands
    b1 = params["b1"].reshape(1, hidden).astype(jnp.float32)
    w2 = params["w2"].astype(jnp.bfloat16)
    b2 = params["b2"].reshape(1, dim).astype(jnp.float32)

    grid = (m_pad // tm, hidden // tn)

    # Resident VMEM footprint estimate (double-buffered pipelined operands,
    # single-buffered scratch, live (tm, tn) intermediates) -> explicit limit.
    vmem_bytes = (
        2 * tm * dim * 4            # x tiles (f32, double-buffered)
        + 2 * dim * tn * 2          # W1 slices (bf16, double-buffered)
        + 2 * tn * dim * 2          # W2 slices (bf16, double-buffered)
        + 2 * tm * dim * 4          # output tiles (f32, double-buffered)
        + tm * dim * 2              # y scratch (bf16)
        + tm * dim * 4              # f32 accumulator scratch
        + 2 * tm * tn * 4           # live (tm, tn) intermediates
        + 2 * (3 * dim * 4 + tn * 4)  # gamma/beta/b2 + b1 slice
    )
    vmem_limit = min(64 * 1024 * 1024,
                     max(32 * 1024 * 1024, int(vmem_bytes * 1.5)))

    cost = pl.CostEstimate(
        flops=int(4 * m_pad * dim * hidden + 20 * m_pad * (dim + hidden)),
        transcendentals=int(m_pad * (2 * hidden + 1)),   # exp + recip per hidden elt, rsqrt per row
        bytes_accessed=int(4 * 2 * m_pad * dim           # x read + out write (f32)
                           + 2 * 2 * dim * hidden        # bf16 weights
                           + 4 * (hidden + 3 * dim)),    # biases + LN params
    )

    out = pl.pallas_call(
        _ffn_kernel,
        out_shape=jax.ShapeDtypeStruct((m_pad, dim), jnp.float32),
        grid_spec=pltpu.PrefetchScalarGridSpec(
            num_scalar_prefetch=0,
            grid=grid,
            in_specs=[
                pl.BlockSpec((tm, dim), lambda i, j: (i, 0)),    # x row tile
                pl.BlockSpec((1, dim), lambda i, j: (0, 0)),     # LN gamma
                pl.BlockSpec((1, dim), lambda i, j: (0, 0)),     # LN beta
                pl.BlockSpec((dim, tn), lambda i, j: (0, j)),    # W1 hidden slice
                pl.BlockSpec((1, tn), lambda i, j: (0, j)),      # b1 hidden slice
                pl.BlockSpec((tn, dim), lambda i, j: (j, 0)),    # W2 hidden slice
                pl.BlockSpec((1, dim), lambda i, j: (0, 0)),     # b2
            ],
            out_specs=pl.BlockSpec((tm, dim), lambda i, j: (i, 0)),
            scratch_shapes=[
                pltpu.VMEM((tm, dim), jnp.bfloat16),   # normalized rows
                pltpu.VMEM((tm, dim), jnp.float32),    # output accumulator
            ],
        ),
        compiler_params=pltpu.CompilerParams(
            dimension_semantics=("parallel", "arbitrary"),
            vmem_limit_bytes=vmem_limit,
        ),
        cost_estimate=cost,
    )(x2, gamma, beta, w1, b1, w2, b2)

    return out[:m].reshape(orig_shape)


# ----------------------- pure-JAX reference (for checking) -----------------------
def feed_forward_ref(x, params):
    mean = jnp.mean(x, axis=-1, keepdims=True)
    var = jnp.mean((x - mean) ** 2, axis=-1, keepdims=True)
    y = (x - mean) / jnp.sqrt(var + _LN_EPS) * params["ln_gamma"] + params["ln_beta"]
    h = y @ params["w1"] + params["b1"]
    h = jax.nn.gelu(h, approximate=False)      # exact GELU, as in nn.GELU()
    return h @ params["w2"] + params["b2"]


if __name__ == "__main__":
    # Small transformer-FFN shapes: batch=2, seq=16, dim=128, hidden_dim=256.
    # (Note: too small to draw MXU/roofline conclusions; sized for a quick check.)
    B, S, DIM, HIDDEN = 2, 16, 128, 256

    key = jax.random.PRNGKey(0)
    ks = jax.random.split(key, 7)

    x = jax.random.normal(ks[0], (B, S, DIM), jnp.float32)

    params = dict(
        ln_gamma=1.0 + 0.1 * jax.random.normal(ks[1], (DIM,), jnp.float32),
        ln_beta=0.1 * jax.random.normal(ks[2], (DIM,), jnp.float32),
        w1=jax.random.normal(ks[3], (DIM, HIDDEN), jnp.float32)
           / jnp.sqrt(jnp.float32(DIM)),
        b1=0.1 * jax.random.normal(ks[4], (HIDDEN,), jnp.float32),
        w2=jax.random.normal(ks[5], (HIDDEN, DIM), jnp.float32)
           / jnp.sqrt(jnp.float32(HIDDEN)),
        b2=0.1 * jax.random.normal(ks[6], (DIM,), jnp.float32),
    )

    out = jax.block_until_ready(feed_forward(x, params))
    ref = jax.block_until_ready(feed_forward_ref(x, params))

    assert out.shape == (B, S, DIM), out.shape
    # Tolerance reflects bf16 MXU operands (bf16 numerical floor), per review note.
    err = float(jnp.max(jnp.abs(out - ref)))
    if err > 7.5e-2:
        raise AssertionError(f"mismatch vs reference, max abs err = {err}")

    print("KERNEL_OK")
</pallas_src>

<mosaic_0001>
module attributes {stable_mosaic.version = 11 : i64} {
  func.func @_ffn_kernel(%arg0: i32, %arg1: i32, %arg2: memref<32x128xf32, #tpu.memory_space<vmem>>, %arg3: memref<1x128xf32, #tpu.memory_space<vmem>>, %arg4: memref<1x128xf32, #tpu.memory_space<vmem>>, %arg5: memref<128x256xbf16, #tpu.memory_space<vmem>>, %arg6: memref<1x256xf32, #tpu.memory_space<vmem>>, %arg7: memref<256x128xbf16, #tpu.memory_space<vmem>>, %arg8: memref<1x128xf32, #tpu.memory_space<vmem>>, %arg9: memref<32x128xf32, #tpu.memory_space<vmem>>, %arg10: memref<32x128xbf16, #tpu.memory_space<vmem>>, %arg11: memref<32x128xf32, #tpu.memory_space<vmem>>) attributes {dimension_semantics = [#tpu.dimension_semantics<parallel>, #tpu.dimension_semantics<arbitrary>], iteration_bounds = array<i64: 1, 1>, scalar_prefetch = 0 : i64, scratch_operands = 2 : i64, tpu.core_type = #tpu.core_type<tc>, window_params = [{transform_indices = @transform_0, window_bounds = array<i64: 32, 128>}, {pipeline_mode = #tpu.pipeline_mode<synchronous>, transform_indices = @transform_1, window_bounds = array<i64: 1, 128>}, {pipeline_mode = #tpu.pipeline_mode<synchronous>, transform_indices = @transform_2, window_bounds = array<i64: 1, 128>}, {transform_indices = @transform_3, window_bounds = array<i64: 128, 256>}, {transform_indices = @transform_4, window_bounds = array<i64: 1, 256>}, {transform_indices = @transform_5, window_bounds = array<i64: 256, 128>}, {pipeline_mode = #tpu.pipeline_mode<synchronous>, transform_indices = @transform_6, window_bounds = array<i64: 1, 128>}, {transform_indices = @transform_7, window_bounds = array<i64: 32, 128>}]} {
    %c0_i32 = arith.constant 0 : i32
    %0 = arith.cmpi eq, %arg1, %c0_i32 : i32
    %1 = arith.extui %0 : i1 to i32
    %c0_i32_0 = arith.constant 0 : i32
    %2 = arith.cmpi ne, %1, %c0_i32_0 : i32
    scf.if %2 {
      %c0_26 = arith.constant 0 : index
      %c0_27 = arith.constant 0 : index
      %52 = vector.load %arg2[%c0_26, %c0_27] : memref<32x128xf32, #tpu.memory_space<vmem>>, vector<32x128xf32>
      %cst_28 = arith.constant dense<0.000000e+00> : vector<32xf32>
      %53 = vector.multi_reduction <add>, %52, %cst_28 [1] : vector<32x128xf32> to vector<32xf32>
      %54 = vector.shape_cast %53 : vector<32xf32> to vector<32x1xf32>
      %55 = arith.mulf %52, %52 : vector<32x128xf32>
      %cst_29 = arith.constant dense<0.000000e+00> : vector<32xf32>
      %56 = vector.multi_reduction <add>, %55, %cst_29 [1] : vector<32x128xf32> to vector<32xf32>
      %57 = vector.shape_cast %56 : vector<32xf32> to vector<32x1xf32>
      %cst_30 = arith.constant 7.812500e-03 : f32
      %58 = vector.broadcast %cst_30 : f32 to vector<32x1xf32>
      %59 = arith.mulf %54, %58 : vector<32x1xf32>
      %cst_31 = arith.constant 7.812500e-03 : f32
      %60 = vector.broadcast %cst_31 : f32 to vector<32x1xf32>
      %61 = arith.mulf %57, %60 : vector<32x1xf32>
      %62 = arith.mulf %59, %59 : vector<32x1xf32>
      %63 = arith.subf %61, %62 : vector<32x1xf32>
      %cst_32 = arith.constant 0.000000e+00 : f32
      %64 = vector.broadcast %cst_32 : f32 to vector<32x1xf32>
      %65 = arith.maximumf %63, %64 : vector<32x1xf32>
      %66 = vector.broadcast %59 : vector<32x1xf32> to vector<32x128xf32>
      %67 = arith.subf %52, %66 : vector<32x128xf32>
      %cst_33 = arith.constant 9.99999974E-6 : f32
      %68 = vector.broadcast %cst_33 : f32 to vector<32x1xf32>
      %69 = arith.addf %65, %68 : vector<32x1xf32>
      %70 = math.rsqrt %69 : vector<32x1xf32>
      %71 = vector.broadcast %70 : vector<32x1xf32> to vector<32x128xf32>
      %72 = arith.mulf %67, %71 : vector<32x128xf32>
      %c0_34 = arith.constant 0 : index
      %c0_35 = arith.constant 0 : index
      %73 = vector.load %arg3[%c0_34, %c0_35] : memref<1x128xf32, #tpu.memory_space<vmem>>, vector<1x128xf32>
      %74 = vector.broadcast %73 : vector<1x128xf32> to vector<32x128xf32>
      %75 = arith.mulf %72, %74 : vector<32x128xf32>
      %c0_36 = arith.constant 0 : index
      %c0_37 = arith.constant 0 : index
      %76 = vector.load %arg4[%c0_36, %c0_37] : memref<1x128xf32, #tpu.memory_space<vmem>>, vector<1x128xf32>
      %77 = vector.broadcast %76 : vector<1x128xf32> to vector<32x128xf32>
      %78 = arith.addf %75, %77 : vector<32x128xf32>
      %79 = arith.truncf %78 : vector<32x128xf32> to vector<32x128xbf16>
      %c0_38 = arith.constant 0 : index
      %c0_39 = arith.constant 0 : index
      %80 = vector.load %arg10[%c0_38, %c0_39] : memref<32x128xbf16, #tpu.memory_space<vmem>>, vector<32x128xbf16>
      tpu.vector_store %arg10[%c0_38, %c0_39], %79 {strides = array<i32>} : memref<32x128xbf16, #tpu.memory_space<vmem>>, vector<32x128xbf16>,
      %cst_40 = arith.constant 0.000000e+00 : f32
      %81 = vector.broadcast %cst_40 : f32 to vector<32x128xf32>
      %c0_41 = arith.constant 0 : index
      %c0_42 = arith.constant 0 : index
      %82 = vector.load %arg11[%c0_41, %c0_42] : memref<32x128xf32, #tpu.memory_space<vmem>>, vector<32x128xf32>
      tpu.vector_store %arg11[%c0_41, %c0_42], %81 {strides = array<i32>} : memref<32x128xf32, #tpu.memory_space<vmem>>, vector<32x128xf32>,
    } else {
    }
    %c0 = arith.constant 0 : index
    %c0_1 = arith.constant 0 : index
    %3 = vector.load %arg10[%c0, %c0_1] : memref<32x128xbf16, #tpu.memory_space<vmem>>, vector<32x128xbf16>
    %c0_2 = arith.constant 0 : index
    %c0_3 = arith.constant 0 : index
    %4 = vector.load %arg5[%c0_2, %c0_3] : memref<128x256xbf16, #tpu.memory_space<vmem>>, vector<128x256xbf16>
    %cst = arith.constant dense<0.000000e+00> : vector<32x256xf32>
    %5 = tpu.matmul %3, %4, %cst {dimension_numbers = #tpu.dot_dimension_numbers<[1], [0], [0], [1], [0, 0, 1, 1], [], []>} : vector<32x128xbf16>, vector<128x256xbf16>, vector<32x256xf32> -> vector<32x256xf32>
    %c0_4 = arith.constant 0 : index
    %c0_5 = arith.constant 0 : index
    %6 = vector.load %arg6[%c0_4, %c0_5] : memref<1x256xf32, #tpu.memory_space<vmem>>, vector<1x256xf32>
    %7 = vector.broadcast %6 : vector<1x256xf32> to vector<32x256xf32>
    %8 = arith.addf %5, %7 : vector<32x256xf32>
    %9 = math.absf %8 : vector<32x256xf32>
    %cst_6 = arith.constant 0.707106769 : f32
    %10 = vector.broadcast %cst_6 : f32 to vector<32x256xf32>
    %11 = arith.mulf %9, %10 : vector<32x256xf32>
    %cst_7 = arith.constant 0.327591091 : f32
    %12 = vector.broadcast %cst_7 : f32 to vector<32x256xf32>
    %13 = arith.mulf %12, %11 : vector<32x256xf32>
    %cst_8 = arith.constant 1.000000e+00 : f32
    %14 = vector.broadcast %cst_8 : f32 to vector<32x256xf32>
    %15 = arith.addf %14, %13 : vector<32x256xf32>
    %16 = tpu.reciprocal %15 {approx = true} : vector<32x256xf32> -> vector<32x256xf32>
    %cst_9 = arith.constant 1.06140542 : f32
    %17 = vector.broadcast %cst_9 : f32 to vector<32x256xf32>
    %18 = arith.mulf %17, %16 : vector<32x256xf32>
    %cst_10 = arith.constant -1.45315206 : f32
    %19 = vector.broadcast %cst_10 : f32 to vector<32x256xf32>
    %20 = arith.addf %18, %19 : vector<32x256xf32>
    %21 = arith.mulf %20, %16 : vector<32x256xf32>
    %cst_11 = arith.constant 1.42141378 : f32
    %22 = vector.broadcast %cst_11 : f32 to vector<32x256xf32>
    %23 = arith.addf %21, %22 : vector<32x256xf32>
    %24 = arith.mulf %23, %16 : vector<32x256xf32>
    %cst_12 = arith.constant -0.284496725 : f32
    %25 = vector.broadcast %cst_12 : f32 to vector<32x256xf32>
    %26 = arith.addf %24, %25 : vector<32x256xf32>
    %27 = arith.mulf %26, %16 : vector<32x256xf32>
    %cst_13 = arith.constant 0.254829586 : f32
    %28 = vector.broadcast %cst_13 : f32 to vector<32x256xf32>
    %29 = arith.addf %27, %28 : vector<32x256xf32>
    %30 = arith.mulf %29, %16 : vector<32x256xf32>
    %cst_14 = arith.constant 0.000000e+00 : f32
    %31 = vector.broadcast %cst_14 : f32 to vector<32x256xf32>
    %32 = arith.subf %31, %11 : vector<32x256xf32>
    %33 = arith.mulf %32, %11 : vector<32x256xf32>
    %34 = math.exp %33 : vector<32x256xf32>
    %35 = arith.mulf %30, %34 : vector<32x256xf32>
    %cst_15 = arith.constant 0.000000e+00 : f32
    %36 = vector.broadcast %cst_15 : f32 to vector<32x256xf32>
    %37 = arith.maximumf %8, %36 : vector<32x256xf32>
    %38 = math.absf %8 : vector<32x256xf32>
    %cst_16 = arith.constant 5.000000e-01 : f32
    %39 = vector.broadcast %cst_16 : f32 to vector<32x256xf32>
    %40 = arith.mulf %39, %38 : vector<32x256xf32>
    %41 = arith.mulf %40, %35 : vector<32x256xf32>
    %42 = arith.subf %37, %41 : vector<32x256xf32>
    %c0_17 = arith.constant 0 : index
    %c0_18 = arith.constant 0 : index
    %43 = vector.load %arg11[%c0_17, %c0_18] : memref<32x128xf32, #tpu.memory_space<vmem>>, vector<32x128xf32>
    %44 = arith.truncf %42 : vector<32x256xf32> to vector<32x256xbf16>
    %c0_19 = arith.constant 0 : index
    %c0_20 = arith.constant 0 : index
    %45 = vector.load %arg7[%c0_19, %c0_20] : memref<256x128xbf16, #tpu.memory_space<vmem>>, vector<256x128xbf16>
    %cst_21 = arith.constant dense<0.000000e+00> : vector<32x128xf32>
    %46 = tpu.matmul %44, %45, %cst_21 {dimension_numbers = #tpu.dot_dimension_numbers<[1], [0], [0], [1], [0, 0, 1, 1], [], []>} : vector<32x256xbf16>, vector<256x128xbf16>, vector<32x128xf32> -> vector<32x128xf32>
    %47 = arith.addf %43, %46 : vector<32x128xf32>
    %c0_22 = arith.constant 0 : index
    %c0_23 = arith.constant 0 : index
    %48 = vector.load %arg11[%c0_22, %c0_23] : memref<32x128xf32, #tpu.memory_space<vmem>>, vector<32x128xf32>
    tpu.vector_store %arg11[%c0_22, %c0_23], %47 {strides = array<i32>} : memref<32x128xf32, #tpu.memory_space<vmem>>, vector<32x128xf32>,
    %c0_i32_24 = arith.constant 0 : i32
    %49 = arith.cmpi eq, %arg1, %c0_i32_24 : i32
    %50 = arith.extui %49 : i1 to i32
    %c0_i32_25 = arith.constant 0 : i32
    %51 = arith.cmpi ne, %50, %c0_i32_25 : i32
    scf.if %51 {
      %c0_26 = arith.constant 0 : index
      %c0_27 = arith.constant 0 : index
      %52 = vector.load %arg11[%c0_26, %c0_27] : memref<32x128xf32, #tpu.memory_space<vmem>>, vector<32x128xf32>
      %c0_28 = arith.constant 0 : index
      %c0_29 = arith.constant 0 : index
      %53 = vector.load %arg8[%c0_28, %c0_29] : memref<1x128xf32, #tpu.memory_space<vmem>>, vector<1x128xf32>
      %54 = vector.broadcast %53 : vector<1x128xf32> to vector<32x128xf32>
      %55 = arith.addf %52, %54 : vector<32x128xf32>
      %c0_30 = arith.constant 0 : index
      %c0_31 = arith.constant 0 : index
      %56 = vector.load %arg9[%c0_30, %c0_31] : memref<32x128xf32, #tpu.memory_space<vmem>>, vector<32x128xf32>
      tpu.vector_store %arg9[%c0_30, %c0_31], %55 {strides = array<i32>} : memref<32x128xf32, #tpu.memory_space<vmem>>, vector<32x128xf32>,
    } else {
    }
    return
  }
  func.func @transform_0(%arg0: i32, %arg1: i32) -> (i32, i32) {
    %c0_i32 = arith.constant 0 : i32
    %c0_i32_0 = arith.constant 0 : i32
    return %arg0, %c0_i32 : i32, i32
  }
  func.func @transform_1(%arg0: i32, %arg1: i32) -> (i32, i32) {
    %c0_i32 = arith.constant 0 : i32
    %c0_i32_0 = arith.constant 0 : i32
    %c0_i32_1 = arith.constant 0 : i32
    return %c0_i32, %c0_i32_0 : i32, i32
  }
  func.func @transform_2(%arg0: i32, %arg1: i32) -> (i32, i32) {
    %c0_i32 = arith.constant 0 : i32
    %c0_i32_0 = arith.constant 0 : i32
    %c0_i32_1 = arith.constant 0 : i32
    return %c0_i32, %c0_i32_0 : i32, i32
  }
  func.func @transform_3(%arg0: i32, %arg1: i32) -> (i32, i32) {
    %c0_i32 = arith.constant 0 : i32
    %c0_i32_0 = arith.constant 0 : i32
    return %c0_i32, %arg1 : i32, i32
  }
  func.func @transform_4(%arg0: i32, %arg1: i32) -> (i32, i32) {
    %c0_i32 = arith.constant 0 : i32
    %c0_i32_0 = arith.constant 0 : i32
    return %c0_i32, %arg1 : i32, i32
  }
  func.func @transform_5(%arg0: i32, %arg1: i32) -> (i32, i32) {
    %c0_i32 = arith.constant 0 : i32
    %c0_i32_0 = arith.constant 0 : i32
    return %arg1, %c0_i32 : i32, i32
  }
  func.func @transform_6(%arg0: i32, %arg1: i32) -> (i32, i32) {
    %c0_i32 = arith.constant 0 : i32
    %c0_i32_0 = arith.constant 0 : i32
    %c0_i32_1 = arith.constant 0 : i32
    return %c0_i32, %c0_i32_0 : i32, i32
  }
  func.func @transform_7(%arg0: i32, %arg1: i32) -> (i32, i32) {
    %c0_i32 = arith.constant 0 : i32
    %c0_i32_0 = arith.constant 0 : i32
    return %arg0, %c0_i32 : i32, i32
  }
}

</mosaic_0001>

<llo_original>
// kernel: tpu_custom_call.1
$region0: #{tpu_custom_call.1}
  #allocation0 [shape = 'u32[]', space=smem, size = 0x4, offset = 0x4, fixed_abs, tag = 'smem constant byte address 0x4 - core index']
  #allocation1 [shape = 'u32[144,128]{1,0:T(1,128)}', space=vmem, size = 0x12000, scoped, tag = 'internal scratch']
  #allocation2 [shape = 'bf16[32,128]{1,0:T(16,128)(2,1)}', space=vmem, size = 0x2000, scoped, tag = 'scratch operand']
  #allocation3 [shape = 'f32[32,128]{1,0:T(8,128)}', space=vmem, size = 0x4000, scoped, tag = 'scratch operand']
  %s0 = inlined_call_operand.hbm [shape: f32[32,128], index: 0, kind: input, shape index: {}]
  %s1 = inlined_call_operand.vmem [shape: f32[1,128], index: 1, kind: input, shape index: {}]
  %s2 = inlined_call_operand.vmem [shape: f32[1,128], index: 2, kind: input, shape index: {}]
  %s3 = inlined_call_operand.hbm [shape: bf16[128,256], index: 3, kind: input, shape index: {}]
  %s4 = inlined_call_operand.vmem [shape: f32[1,256], index: 4, kind: input, shape index: {}]
  %s5 = inlined_call_operand.hbm [shape: bf16[256,128], index: 5, kind: input, shape index: {}]
  %s6 = inlined_call_operand.vmem [shape: f32[1,128], index: 6, kind: input, shape index: {}]
  %s7 = inlined_call_operand.hbm [shape: f32[32,128], index: 7, kind: output, shape index: {}]
  %s8 = sld [smem:[#allocation0]]
  $region58: #{tpu_custom_call.1} parent=0
    _
  %s10 = ssub.s32 1, %s8
  %s11 = scalar_select 0, %s10, %s8
  $region1: #{tpu_custom_call.1} parent=0
    #allocation4 [shape = 'u8[16384]{0}', space=vmem, size = 0x4000, scoped, tag = 'input window, operand 0, single buffered']
    #allocation5 [shape = 's32[1]{0}', space=sflag, size = 0x4, scoped, tag = 'scoped memory for tpu_custom_call.1']
    #allocation6 [shape = 's32[1]{0}', space=sflag, size = 0x4, scoped, tag = 'scoped memory for tpu_custom_call.1']
    #allocation7 [shape = 'u8[65536]{0}', space=vmem, size = 0x10000, scoped, tag = 'input window, operand 3, single buffered']
    #allocation8 [shape = 's32[1]{0}', space=sflag, size = 0x4, scoped, tag = 'scoped memory for tpu_custom_call.1']
    #allocation9 [shape = 'u8[65536]{0}', space=vmem, size = 0x10000, scoped, tag = 'input window, operand 5, single buffered']
    #allocation10 [shape = 'u8[16384]{0}', space=vmem, size = 0x4000, scoped, tag = 'output window, operand 0, single buffered']
    %12 = vsyncpa [#allocation5], 0
    %13 = vsyncpa [#allocation8], 0
    %14 = vsyncpa [#allocation6], 0
    // Predicated region
    $region2: #{tpu_custom_call.1} parent=1 // pred_check
      _
    $region3: #{tpu_custom_call.1} parent=1 // pred_check_branch
      %16 = sbr.rel (0) target = $region5
    $region4: #{tpu_custom_call.1} parent=1 // pred_region
      %s18 = ssub.s32 512, 512
      %19 = vsyncadd [#allocation5], %s18
      %s20 = sshll.u32 [#allocation4], 4
      %s21 = int_to_ptr.vmem [resolvable:$true] %s20
      %26 = dma.hbm_to_vmem [thread:$0]  %s0, 512, %s21, [#allocation5], 128, 128, 8
    $region5: #{tpu_custom_call.1} parent=1 // pred_fallthru
      _
    // Predicated region
    $region6: #{tpu_custom_call.1} parent=1 // pred_check
      _
    $region7: #{tpu_custom_call.1} parent=1 // pred_check_branch
      %28 = sbr.rel (0) target = $region9
    $region8: #{tpu_custom_call.1} parent=1 // pred_region
      _
    $region9: #{tpu_custom_call.1} parent=1 // pred_fallthru
      _
    // Predicated region
    $region10: #{tpu_custom_call.1} parent=1 // pred_check
      _
    $region11: #{tpu_custom_call.1} parent=1 // pred_check_branch
      %30 = sbr.rel (0) target = $region13
    $region12: #{tpu_custom_call.1} parent=1 // pred_region
      _
    $region13: #{tpu_custom_call.1} parent=1 // pred_fallthru
      _
    // Predicated region
    $region14: #{tpu_custom_call.1} parent=1 // pred_check
      _
    $region15: #{tpu_custom_call.1} parent=1 // pred_check_branch
      %32 = sbr.rel (0) target = $region17
    $region16: #{tpu_custom_call.1} parent=1 // pred_region
      %s34 = ssub.s32 2048, 2048
      %35 = vsyncadd [#allocation8], %s34
      %s36 = sshll.u32 [#allocation7], 4
      %s37 = int_to_ptr.vmem [resolvable:$true] %s36
      %42 = dma.hbm_to_vmem [thread:$0]  %s3, 2048, %s37, [#allocation8], 128, 128, 8
    $region17: #{tpu_custom_call.1} parent=1 // pred_fallthru
      _
    // Predicated region
    $region18: #{tpu_custom_call.1} parent=1 // pred_check
      _
    $region19: #{tpu_custom_call.1} parent=1 // pred_check_branch
      %44 = sbr.rel (0) target = $region21
    $region20: #{tpu_custom_call.1} parent=1 // pred_region
      _
    $region21: #{tpu_custom_call.1} parent=1 // pred_fallthru
      _
    // Predicated region
    $region22: #{tpu_custom_call.1} parent=1 // pred_check
      _
    $region23: #{tpu_custom_call.1} parent=1 // pred_check_branch
      %46 = sbr.rel (0) target = $region25
    $region24: #{tpu_custom_call.1} parent=1 // pred_region
      %s48 = ssub.s32 2048, 2048
      %49 = vsyncadd [#allocation8], %s48
      %s50 = sshll.u32 [#allocation9], 4
      %s51 = int_to_ptr.vmem [resolvable:$true] %s50
      %56 = dma.hbm_to_vmem [thread:$0]  %s5, 2048, %s51, [#allocation8], 64, 64, 4
    $region25: #{tpu_custom_call.1} parent=1 // pred_fallthru
      _
    // Predicated region
    $region26: #{tpu_custom_call.1} parent=1 // pred_check
      _
    $region27: #{tpu_custom_call.1} parent=1 // pred_check_branch
      %58 = sbr.rel (0) target = $region29
    $region28: #{tpu_custom_call.1} parent=1 // pred_region
      _
    $region29: #{tpu_custom_call.1} parent=1 // pred_fallthru
      _
    // Predicated region
    $region30: #{tpu_custom_call.1} parent=1 // pred_check
      _
    $region31: #{tpu_custom_call.1} parent=1 // pred_check_branch
      %60 = sbr.rel (0) target = $region33
    $region32: #{tpu_custom_call.1} parent=1 // pred_region
      %61 = dma.done [#allocation5], 512
    $region33: #{tpu_custom_call.1} parent=1 // pred_fallthru
      _
    // Predicated region
    $region34: #{tpu_custom_call.1} parent=1 // pred_check
      _
    $region35: #{tpu_custom_call.1} parent=1 // pred_check_branch
      %63 = sbr.rel (0) target = $region37
    $region36: #{tpu_custom_call.1} parent=1 // pred_region
      %64 = dma.done [#allocation8], 2048
    $region37: #{tpu_custom_call.1} parent=1 // pred_fallthru
      _
    // Predicated region
    $region38: #{tpu_custom_call.1} parent=1 // pred_check
      _
    $region39: #{tpu_custom_call.1} parent=1 // pred_check_branch
      %66 = sbr.rel (0) target = $region41
    $region40: #{tpu_custom_call.1} parent=1 // pred_region
      %67 = dma.done [#allocation8], 2048
    $region41: #{tpu_custom_call.1} parent=1 // pred_fallthru
      _
    %p69 = scmp.eq.s32.totalorder 0, 0
    // Predicated region
    $region42: #{tpu_custom_call.1} parent=1 // pred_check
      %p70 = pneg %p69
    $region43: #{tpu_custom_call.1} parent=1 // pred_check_branch
      %72 = sbr.rel (%p70) target = $region45
    $region44: #{tpu_custom_call.1} parent=1 // pred_region
      %v73 = vld [vmem:[#allocation4] sm:$0xff]
      %v74 = vld [vmem:[#allocation4 + $0x8] sm:$0xff]
      %v75 = vld [vmem:[#allocation4 + $0x10] sm:$0xff]
      %v76 = vld [vmem:[#allocation4 + $0x18] sm:$0xff]
      %77 = vadd.xlane.f32.xlu0 %v73
      %v78 = vpop.xlane.xlu0 %77
      %79 = vadd.xlane.f32.xlu0 %v74
      %v80 = vpop.xlane.xlu0 %79
      %81 = vadd.xlane.f32.xlu0 %v75
      %v82 = vpop.xlane.xlu0 %81
      %83 = vadd.xlane.f32.xlu0 %v76
      %v84 = vpop.xlane.xlu0 %83
      %v85 = vmul.f32 %v73, %v73
      %v86 = vmul.f32 %v74, %v74
      %v87 = vmul.f32 %v75, %v75
      %v88 = vmul.f32 %v76, %v76
      %89 = vadd.xlane.f32.xlu0 %v85
      %v90 = vpop.xlane.xlu0 %89
      %91 = vadd.xlane.f32.xlu0 %v86
      %v92 = vpop.xlane.xlu0 %91
      %93 = vadd.xlane.f32.xlu0 %v87
      %v94 = vpop.xlane.xlu0 %93
      %95 = vadd.xlane.f32.xlu0 %v88
      %v96 = vpop.xlane.xlu0 %95
      %v97 = vmul.f32 %v78, 0.0078125
      %v98 = vmul.f32 %v80, 0.0078125
      %v99 = vmul.f32 %v82, 0.0078125
      %v100 = vmul.f32 %v84, 0.0078125
      %v101 = vmul.f32 %v90, 0.0078125
      %v102 = vmul.f32 %v92, 0.0078125
      %v103 = vmul.f32 %v94, 0.0078125
      %v104 = vmul.f32 %v96, 0.0078125
      %v105 = vmul.f32 %v97, %v97
      %v106 = vmul.f32 %v98, %v98
      %v107 = vmul.f32 %v99, %v99
      %v108 = vmul.f32 %v100, %v100
      %v109 = vsub.f32 %v101, %v105
      %v110 = vsub.f32 %v102, %v106
      %v111 = vsub.f32 %v103, %v107
      %v112 = vsub.f32 %v104, %v108
      %v113 = vmax.f32 %v109, 0.0
      %v114 = vmax.f32 %v110, 0.0
      %v115 = vmax.f32 %v111, 0.0
      %v116 = vmax.f32 %v112, 0.0
      %v117 = vsub.f32 %v73, %v97
      %v118 = vsub.f32 %v74, %v98
      %v119 = vsub.f32 %v75, %v99
      %v120 = vsub.f32 %v76, %v100
      %v121 = vadd.f32 %v113, 1e-05
      %v122 = vadd.f32 %v114, 1e-05
      %v123 = vadd.f32 %v115, 1e-05
      %v124 = vadd.f32 %v116, 1e-05
      %v125 = vrsqrt.pop %v121
      %v126 = vrsqrt.pop %v122
      %v127 = vrsqrt.pop %v123
      %v128 = vrsqrt.pop %v124
      %v129 = vmul.f32 %v117, %v125
      %v130 = vmul.f32 %v118, %v126
      %v131 = vmul.f32 %v119, %v127
      %v132 = vmul.f32 %v120, %v128
      %v133 = vld [vmem:[%s1] sm:$0x1]
      %v135 = vlaneseq
      %v136 = vshrl.u32 %v135, 7
      %v137 = vsub.s32 0, %v136
      %v138 = vrot.slane %v133, %v137
      %v140 = vmul.f32 %v129, %v138
      %v141 = vmul.f32 %v130, %v138
      %v142 = vmul.f32 %v131, %v138
      %v143 = vmul.f32 %v132, %v138
      %v144 = vld [vmem:[%s2] sm:$0x1]
      %v146 = vlaneseq
      %v147 = vshrl.u32 %v146, 7
      %v148 = vsub.s32 0, %v147
      %v149 = vrot.slane %v144, %v148
      %v151 = vadd.f32 %v140, %v149
      %v152 = vadd.f32 %v141, %v149
      %v153 = vadd.f32 %v142, %v149
      %v154 = vadd.f32 %v143, %v149
      %v155 = vpack.c.bf16 %v152, %v151
      %v156 = vpack.c.bf16 %v154, %v153
      %157 = vst [vmem:[#allocation2] sm:$0xff] %v155
      %158 = vst [vmem:[#allocation2 + $0x8] sm:$0xff] %v156
      %159 = vst [vmem:[#allocation3] sm:$0xff] 0.0
      %160 = vst [vmem:[#allocation3 + $0x8] sm:$0xff] 0.0
      %161 = vst [vmem:[#allocation3 + $0x10] sm:$0xff] 0.0
      %162 = vst [vmem:[#allocation3 + $0x18] sm:$0xff] 0.0
    $region45: #{tpu_custom_call.1} parent=1 // pred_fallthru
      _
    %v163 = vld [vmem:[#allocation2] sm:$0xff]
    %v164 = vld [vmem:[#allocation2 + $0x8] sm:$0xff]
    %v165 = vld [vmem:[#allocation7] sm:$0xff]
    %v166 = vld [vmem:[#allocation7 + $0x8] sm:$0xff]
    %v167 = vld [vmem:[#allocation7 + $0x10] sm:$0xff]
    %v168 = vld [vmem:[#allocation7 + $0x18] sm:$0xff]
    %v169 = vld [vmem:[#allocation7 + $0x20] sm:$0xff]
    %v170 = vld [vmem:[#allocation7 + $0x28] sm:$0xff]
    %v171 = vld [vmem:[#allocation7 + $0x30] sm:$0xff]
    %v172 = vld [vmem:[#allocation7 + $0x38] sm:$0xff]
    %v173 = vld [vmem:[#allocation7 + $0x40] sm:$0xff]
    %v174 = vld [vmem:[#allocation7 + $0x48] sm:$0xff]
    %v175 = vld [vmem:[#allocation7 + $0x50] sm:$0xff]
    %v176 = vld [vmem:[#allocation7 + $0x58] sm:$0xff]
    %v177 = vld [vmem:[#allocation7 + $0x60] sm:$0xff]
    %v178 = vld [vmem:[#allocation7 + $0x68] sm:$0xff]
    %v179 = vld [vmem:[#allocation7 + $0x70] sm:$0xff]
    %v180 = vld [vmem:[#allocation7 + $0x78] sm:$0xff]
    %v181 = vld [vmem:[%s4] sm:$0x3]
    %v183 = vlaneseq
    %v184 = vshrl.u32 %v183, 7
    %v185 = vsub.s32 0, %v184
    %v186 = vrot.slane %v181, %v185
    %v187 = vlaneseq
    %v188 = vshrl.u32 %v187, 7
    %v189 = vsub.s32 1, %v188
    %v190 = vrot.slane %v181, %v189
    %v209 = vunpack.c.l.b16 %v165
    %v210 = vunpack.c.h.b16 %v165
    %v211 = vunpack.c.l.b16 %v166
    %v212 = vunpack.c.h.b16 %v166
    %v213 = vunpack.c.l.b16 %v167
    %v214 = vunpack.c.h.b16 %v167
    %v215 = vunpack.c.l.b16 %v168
    %v216 = vunpack.c.h.b16 %v168
    %v217 = vunpack.c.l.b16 %v169
    %v218 = vunpack.c.h.b16 %v169
    %v219 = vunpack.c.l.b16 %v170
    %v220 = vunpack.c.h.b16 %v170
    %v221 = vunpack.c.l.b16 %v171
    %v222 = vunpack.c.h.b16 %v171
    %v223 = vunpack.c.l.b16 %v172
    %v224 = vunpack.c.h.b16 %v172
    %v225 = vunpack.c.l.b16 %v173
    %v226 = vunpack.c.h.b16 %v173
    %v227 = vunpack.c.l.b16 %v174
    %v228 = vunpack.c.h.b16 %v174
    %v229 = vunpack.c.l.b16 %v175
    %v230 = vunpack.c.h.b16 %v175
    %v231 = vunpack.c.l.b16 %v176
    %v232 = vunpack.c.h.b16 %v176
    %v233 = vunpack.c.l.b16 %v177
    %v234 = vunpack.c.h.b16 %v177
    %v235 = vunpack.c.l.b16 %v178
    %v236 = vunpack.c.h.b16 %v178
    %v237 = vunpack.c.l.b16 %v179
    %v238 = vunpack.c.h.b16 %v179
    %v239 = vunpack.c.l.b16 %v180
    %v240 = vunpack.c.h.b16 %v180
    %v241 = vpack.c.b16 %v211, %v209
    %v242 = vpack.c.b16 %v212, %v210
    %v243 = vpack.c.b16 %v215, %v213
    %v244 = vpack.c.b16 %v216, %v214
    %v245 = vpack.c.b16 %v219, %v217
    %v246 = vpack.c.b16 %v220, %v218
    %v247 = vpack.c.b16 %v223, %v221
    %v248 = vpack.c.b16 %v224, %v222
    %v249 = vpack.c.b16 %v227, %v225
    %v250 = vpack.c.b16 %v228, %v226
    %v251 = vpack.c.b16 %v231, %v229
    %v252 = vpack.c.b16 %v232, %v230
    %v253 = vpack.c.b16 %v235, %v233
    %v254 = vpack.c.b16 %v236, %v234
    %v255 = vpack.c.b16 %v239, %v237
    %v256 = vpack.c.b16 %v240, %v238
    %273 = vmatprep.subr.bf16.mxu0 %v242
    %274 = vmatpush1.bf16.msra.mxu0 %v241
    %275 = vmatprep.subr.bf16.mxu0 %v244
    %276 = vmatpush1.bf16.msra.mxu0 %v243
    %277 = vmatprep.subr.bf16.mxu0 %v246
    %278 = vmatpush1.bf16.msra.mxu0 %v245
    %279 = vmatprep.subr.bf16.mxu0 %v248
    %280 = vmatpush1.bf16.msra.mxu0 %v247
    %281 = vmatprep.subr.bf16.mxu0 %v250
    %282 = vmatpush1.bf16.msra.mxu0 %v249
    %283 = vmatprep.subr.bf16.mxu0 %v252
    %284 = vmatpush1.bf16.msra.mxu0 %v251
    %285 = vmatprep.subr.bf16.mxu0 %v254
    %286 = vmatpush1.bf16.msra.mxu0 %v253
    %287 = vmatprep.subr.bf16.mxu0 %v256
    %288 = vmatpush1.bf16.msra.mxu0 %v255
    %289 = vmatprep.subr.bf16.mxu0 0
    %290 = vmatpush1.bf16.msra.mxu0 0
    %291 = vmatprep.subr.bf16.mxu0 0
    %292 = vmatpush1.bf16.msra.mxu0 0
    %293 = vmatprep.subr.bf16.mxu0 0
    %294 = vmatpush1.bf16.msra.mxu0 0
    %295 = vmatprep.subr.bf16.mxu0 0
    %296 = vmatpush1.bf16.msra.mxu0 0
    %297 = vmatprep.subr.bf16.mxu0 0
    %298 = vmatpush1.bf16.msra.mxu0 0
    %299 = vmatprep.subr.bf16.mxu0 0
    %300 = vmatpush1.bf16.msra.mxu0 0
    %301 = vmatprep.subr.bf16.mxu0 0
    %302 = vmatpush1.bf16.msra.mxu0 0
    %303 = vmatprep.subr.bf16.mxu0 0
    %304 = vmatpush1.bf16.msra.mxu0 0
    %305 = vmatprep.mubr.bf16.mxu0 0
    %306 = vmatmul.mubr.bf16.gmra.mrb[0].mxu0 %v163
    %v307 = vpop.f32.mrb[0].mxu0
    %v308 = vadd.f32 %v186, %v307
    %v309 = vpop.f32.mrb[0].mxu0
    %v310 = vadd.f32 %v190, %v309
    %v311 = vpop.f32.mrb[0].mxu0
    %v312 = vadd.f32 %v186, %v311
    %v313 = vpop.f32.mrb[0].mxu0
    %v314 = vadd.f32 %v190, %v313
    %315 = vmatprep.mubr.bf16.mxu0 0
    %316 = vmatmul.mubr.bf16.gmra.mrb[0].mxu0 %v164
    %v317 = vpop.f32.mrb[0].mxu0
    %v318 = vadd.f32 %v186, %v317
    %v319 = vpop.f32.mrb[0].mxu0
    %v320 = vadd.f32 %v190, %v319
    %v321 = vpop.f32.mrb[0].mxu0
    %v322 = vadd.f32 %v186, %v321
    %v323 = vpop.f32.mrb[0].mxu0
    %v324 = vadd.f32 %v190, %v323
    %325 = vdwg.mxu0
    %v326 = vand.u32 2147483647, %v308
    %v327 = vand.u32 2147483647, %v310
    %v328 = vand.u32 2147483647, %v312
    %v329 = vand.u32 2147483647, %v314
    %v330 = vand.u32 2147483647, %v318
    %v331 = vand.u32 2147483647, %v320
    %v332 = vand.u32 2147483647, %v322
    %v333 = vand.u32 2147483647, %v324
    %v334 = vmul.f32 %v326, 0.70710677
    %v335 = vmul.f32 %v327, 0.70710677
    %v336 = vmul.f32 %v328, 0.70710677
    %v337 = vmul.f32 %v329, 0.70710677
    %v338 = vmul.f32 %v330, 0.70710677
    %v339 = vmul.f32 %v331, 0.70710677
    %v340 = vmul.f32 %v332, 0.70710677
    %v341 = vmul.f32 %v333, 0.70710677
    %v342 = vmul.f32 %v334, 0.3275911
    %v343 = vmul.f32 %v335, 0.3275911
    %v344 = vmul.f32 %v336, 0.3275911
    %v345 = vmul.f32 %v337, 0.3275911
    %v346 = vmul.f32 %v338, 0.3275911
    %v347 = vmul.f32 %v339, 0.3275911
    %v348 = vmul.f32 %v340, 0.3275911
    %v349 = vmul.f32 %v341, 0.3275911
    %v350 = vadd.f32 %v342, 1.0
    %v351 = vadd.f32 %v343, 1.0
    %v352 = vadd.f32 %v344, 1.0
    %v353 = vadd.f32 %v345, 1.0
    %v354 = vadd.f32 %v346, 1.0
    %v355 = vadd.f32 %v347, 1.0
    %v356 = vadd.f32 %v348, 1.0
    %v357 = vadd.f32 %v349, 1.0
    %v358 = vrcp.pop %v350
    %v359 = vrcp.pop %v351
    %v360 = vrcp.pop %v352
    %v361 = vrcp.pop %v353
    %v362 = vrcp.pop %v354
    %v363 = vrcp.pop %v355
    %v364 = vrcp.pop %v356
    %v365 = vrcp.pop %v357
    %v366 = vmul.f32 %v358, 1.0614054
    %v367 = vmul.f32 %v359, 1.0614054
    %v368 = vmul.f32 %v360, 1.0614054
    %v369 = vmul.f32 %v361, 1.0614054
    %v370 = vmul.f32 %v362, 1.0614054
    %v371 = vmul.f32 %v363, 1.0614054
    %v372 = vmul.f32 %v364, 1.0614054
    %v373 = vmul.f32 %v365, 1.0614054
    %v374 = vadd.f32 %v366, -1.4531521
    %v375 = vadd.f32 %v367, -1.4531521
    %v376 = vadd.f32 %v368, -1.4531521
    %v377 = vadd.f32 %v369, -1.4531521
    %v378 = vadd.f32 %v370, -1.4531521
    %v379 = vadd.f32 %v371, -1.4531521
    %v380 = vadd.f32 %v372, -1.4531521
    %v381 = vadd.f32 %v373, -1.4531521
    %v382 = vmul.f32 %v374, %v358
    %v383 = vmul.f32 %v375, %v359
    %v384 = vmul.f32 %v376, %v360
    %v385 = vmul.f32 %v377, %v361
    %v386 = vmul.f32 %v378, %v362
    %v387 = vmul.f32 %v379, %v363
    %v388 = vmul.f32 %v380, %v364
    %v389 = vmul.f32 %v381, %v365
    %v390 = vadd.f32 %v382, 1.4214138
    %v391 = vadd.f32 %v383, 1.4214138
    %v392 = vadd.f32 %v384, 1.4214138
    %v393 = vadd.f32 %v385, 1.4214138
    %v394 = vadd.f32 %v386, 1.4214138
    %v395 = vadd.f32 %v387, 1.4214138
    %v396 = vadd.f32 %v388, 1.4214138
    %v397 = vadd.f32 %v389, 1.4214138
    %v398 = vmul.f32 %v390, %v358
    %v399 = vmul.f32 %v391, %v359
    %v400 = vmul.f32 %v392, %v360
    %v401 = vmul.f32 %v393, %v361
    %v402 = vmul.f32 %v394, %v362
    %v403 = vmul.f32 %v395, %v363
    %v404 = vmul.f32 %v396, %v364
    %v405 = vmul.f32 %v397, %v365
    %v406 = vadd.f32 %v398, -0.28449672
    %v407 = vadd.f32 %v399, -0.28449672
    %v408 = vadd.f32 %v400, -0.28449672
    %v409 = vadd.f32 %v401, -0.28449672
    %v410 = vadd.f32 %v402, -0.28449672
    %v411 = vadd.f32 %v403, -0.28449672
    %v412 = vadd.f32 %v404, -0.28449672
    %v413 = vadd.f32 %v405, -0.28449672
    %v414 = vmul.f32 %v406, %v358
    %v415 = vmul.f32 %v407, %v359
    %v416 = vmul.f32 %v408, %v360
    %v417 = vmul.f32 %v409, %v361
    %v418 = vmul.f32 %v410, %v362
    %v419 = vmul.f32 %v411, %v363
    %v420 = vmul.f32 %v412, %v364
    %v421 = vmul.f32 %v413, %v365
    %v422 = vadd.f32 %v414, 0.2548296
    %v423 = vadd.f32 %v415, 0.2548296
    %v424 = vadd.f32 %v416, 0.2548296
    %v425 = vadd.f32 %v417, 0.2548296
    %v426 = vadd.f32 %v418, 0.2548296
    %v427 = vadd.f32 %v419, 0.2548296
    %v428 = vadd.f32 %v420, 0.2548296
    %v429 = vadd.f32 %v421, 0.2548296
    %v430 = vmul.f32 %v422, %v358
    %v431 = vmul.f32 %v423, %v359
    %v432 = vmul.f32 %v424, %v360
    %v433 = vmul.f32 %v425, %v361
    %v434 = vmul.f32 %v426, %v362
    %v435 = vmul.f32 %v427, %v363
    %v436 = vmul.f32 %v428, %v364
    %v437 = vmul.f32 %v429, %v365
    %v438 = vsub.f32 0.0, %v334
    %v439 = vsub.f32 0.0, %v335
    %v440 = vsub.f32 0.0, %v336
    %v441 = vsub.f32 0.0, %v337
    %v442 = vsub.f32 0.0, %v338
    %v443 = vsub.f32 0.0, %v339
    %v444 = vsub.f32 0.0, %v340
    %v445 = vsub.f32 0.0, %v341
    %v446 = vmul.f32 %v438, %v334
    %v447 = vmul.f32 %v439, %v335
    %v448 = vmul.f32 %v440, %v336
    %v449 = vmul.f32 %v441, %v337
    %v450 = vmul.f32 %v442, %v338
    %v451 = vmul.f32 %v443, %v339
    %v452 = vmul.f32 %v444, %v340
    %v453 = vmul.f32 %v445, %v341
    %v454 = vmul.f32 %v446, 1.442695
    %v455 = vpow.pop %v454
    %v456 = vmul.f32 %v447, 1.442695
    %v457 = vpow.pop %v456
    %v458 = vmul.f32 %v448, 1.442695
    %v459 = vpow.pop %v458
    %v460 = vmul.f32 %v449, 1.442695
    %v461 = vpow.pop %v460
    %v462 = vmul.f32 %v450, 1.442695
    %v463 = vpow.pop %v462
    %v464 = vmul.f32 %v451, 1.442695
    %v465 = vpow.pop %v464
    %v466 = vmul.f32 %v452, 1.442695
    %v467 = vpow.pop %v466
    %v468 = vmul.f32 %v453, 1.442695
    %v469 = vpow.pop %v468
    %v470 = vmul.f32 %v430, %v455
    %v471 = vmul.f32 %v431, %v457
    %v472 = vmul.f32 %v432, %v459
    %v473 = vmul.f32 %v433, %v461
    %v474 = vmul.f32 %v434, %v463
    %v475 = vmul.f32 %v435, %v465
    %v476 = vmul.f32 %v436, %v467
    %v477 = vmul.f32 %v437, %v469
    %v478 = vmax.f32 %v308, 0.0
    %v479 = vmax.f32 %v310, 0.0
    %v480 = vmax.f32 %v312, 0.0
    %v481 = vmax.f32 %v314, 0.0
    %v482 = vmax.f32 %v318, 0.0
    %v483 = vmax.f32 %v320, 0.0
    %v484 = vmax.f32 %v322, 0.0
    %v485 = vmax.f32 %v324, 0.0
    %v486 = vmul.f32 %v326, 0.5
    %v487 = vmul.f32 %v327, 0.5
    %v488 = vmul.f32 %v328, 0.5
    %v489 = vmul.f32 %v329, 0.5
    %v490 = vmul.f32 %v330, 0.5
    %v491 = vmul.f32 %v331, 0.5
    %v492 = vmul.f32 %v332, 0.5
    %v493 = vmul.f32 %v333, 0.5
    %v494 = vmul.f32 %v486, %v470
    %v495 = vmul.f32 %v487, %v471
    %v496 = vmul.f32 %v488, %v472
    %v497 = vmul.f32 %v489, %v473
    %v498 = vmul.f32 %v490, %v474
    %v499 = vmul.f32 %v491, %v475
    %v500 = vmul.f32 %v492, %v476
    %v501 = vmul.f32 %v493, %v477
    %v502 = vsub.f32 %v478, %v494
    %v503 = vsub.f32 %v479, %v495
    %v504 = vsub.f32 %v480, %v496
    %v505 = vsub.f32 %v481, %v497
    %v506 = vsub.f32 %v482, %v498
    %v507 = vsub.f32 %v483, %v499
    %v508 = vsub.f32 %v484, %v500
    %v509 = vsub.f32 %v485, %v501
    %v510 = vld [vmem:[#allocation3] sm:$0xff]
    %v511 = vld [vmem:[#allocation3 + $0x8] sm:$0xff]
    %v512 = vld [vmem:[#allocation3 + $0x10] sm:$0xff]
    %v513 = vld [vmem:[#allocation3 + $0x18] sm:$0xff]
    %v514 = vpack.c.bf16 %v504, %v502
    %v515 = vpack.c.bf16 %v505, %v503
    %v516 = vpack.c.bf16 %v508, %v506
    %v517 = vpack.c.bf16 %v509, %v507
    %v518 = vld [vmem:[#allocation9] sm:$0xf]
    %v519 = vld [vmem:[#allocation9 + $0x4] sm:$0xf]
    %v520 = vld [vmem:[#allocation9 + $0x8] sm:$0xf]
    %v521 = vld [vmem:[#allocation9 + $0xc] sm:$0xf]
    %v522 = vld [vmem:[#allocation9 + $0x10] sm:$0xf]
    %v523 = vld [vmem:[#allocation9 + $0x14] sm:$0xf]
    %v524 = vld [vmem:[#allocation9 + $0x18] sm:$0xf]
    %v525 = vld [vmem:[#allocation9 + $0x1c] sm:$0xf]
    %v526 = vld [vmem:[#allocation9 + $0x20] sm:$0xf]
    %v527 = vld [vmem:[#allocation9 + $0x24] sm:$0xf]
    %v528 = vld [vmem:[#allocation9 + $0x28] sm:$0xf]
    %v529 = vld [vmem:[#allocation9 + $0x2c] sm:$0xf]
    %v530 = vld [vmem:[#allocation9 + $0x30] sm:$0xf]
    %v531 = vld [vmem:[#allocation9 + $0x34] sm:$0xf]
    %v532 = vld [vmem:[#allocation9 + $0x38] sm:$0xf]
    %v533 = vld [vmem:[#allocation9 + $0x3c] sm:$0xf]
    %v534 = vld [vmem:[#allocation9 + $0x40] sm:$0xf]
    %v535 = vld [vmem:[#allocation9 + $0x44] sm:$0xf]
    %v536 = vld [vmem:[#allocation9 + $0x48] sm:$0xf]
    %v537 = vld [vmem:[#allocation9 + $0x4c] sm:$0xf]
    %v538 = vld [vmem:[#allocation9 + $0x50] sm:$0xf]
    %v539 = vld [vmem:[#allocation9 + $0x54] sm:$0xf]
    %v540 = vld [vmem:[#allocation9 + $0x58] sm:$0xf]
    %v541 = vld [vmem:[#allocation9 + $0x5c] sm:$0xf]
    %v542 = vld [vmem:[#allocation9 + $0x60] sm:$0xf]
    %v543 = vld [vmem:[#allocation9 + $0x64] sm:$0xf]
    %v544 = vld [vmem:[#allocation9 + $0x68] sm:$0xf]
    %v545 = vld [vmem:[#allocation9 + $0x6c] sm:$0xf]
    %v546 = vld [vmem:[#allocation9 + $0x70] sm:$0xf]
    %v547 = vld [vmem:[#allocation9 + $0x74] sm:$0xf]
    %v548 = vld [vmem:[#allocation9 + $0x78] sm:$0xf]
    %v549 = vld [vmem:[#allocation9 + $0x7c] sm:$0xf]
    %v582 = vunpack.c.l.b16 %v518
    %v583 = vunpack.c.l.b16 %v519
    %v584 = vunpack.c.l.b16 %v520
    %v585 = vunpack.c.l.b16 %v521
    %v586 = vunpack.c.l.b16 %v522
    %v587 = vunpack.c.l.b16 %v523
    %v588 = vunpack.c.l.b16 %v524
    %v589 = vunpack.c.l.b16 %v525
    %v590 = vunpack.c.l.b16 %v526
    %v591 = vunpack.c.l.b16 %v527
    %v592 = vunpack.c.l.b16 %v528
    %v593 = vunpack.c.l.b16 %v529
    %v594 = vunpack.c.l.b16 %v530
    %v595 = vunpack.c.l.b16 %v531
    %v596 = vunpack.c.l.b16 %v532
    %v597 = vunpack.c.l.b16 %v533
    %v598 = vunpack.c.l.b16 %v534
    %v599 = vunpack.c.l.b16 %v535
    %v600 = vunpack.c.l.b16 %v536
    %v601 = vunpack.c.l.b16 %v537
    %v602 = vunpack.c.l.b16 %v538
    %v603 = vunpack.c.l.b16 %v539
    %v604 = vunpack.c.l.b16 %v540
    %v605 = vunpack.c.l.b16 %v541
    %v606 = vunpack.c.l.b16 %v542
    %v607 = vunpack.c.l.b16 %v543
    %v608 = vunpack.c.l.b16 %v544
    %v609 = vunpack.c.l.b16 %v545
    %v610 = vunpack.c.l.b16 %v546
    %v611 = vunpack.c.l.b16 %v547
    %v612 = vunpack.c.l.b16 %v548
    %v613 = vunpack.c.l.b16 %v549
    %v614 = vpack.c.b16 %v583, %v582
    %v615 = vpack.c.b16 %v585, %v584
    %v616 = vpack.c.b16 %v587, %v586
    %v617 = vpack.c.b16 %v589, %v588
    %v618 = vpack.c.b16 %v591, %v590
    %v619 = vpack.c.b16 %v593, %v592
    %v620 = vpack.c.b16 %v595, %v594
    %v621 = vpack.c.b16 %v597, %v596
    %v622 = vpack.c.b16 %v599, %v598
    %v623 = vpack.c.b16 %v601, %v600
    %v624 = vpack.c.b16 %v603, %v602
    %v625 = vpack.c.b16 %v605, %v604
    %v626 = vpack.c.b16 %v607, %v606
    %v627 = vpack.c.b16 %v609, %v608
    %v628 = vpack.c.b16 %v611, %v610
    %v629 = vpack.c.b16 %v613, %v612
    %646 = vmatprep.subr.bf16.mxu0 0
    %647 = vmatpush1.bf16.msra.mxu0 %v614
    %648 = vmatprep.subr.bf16.mxu0 0
    %649 = vmatpush1.bf16.msra.mxu0 %v615
    %650 = vmatprep.subr.bf16.mxu0 0
    %651 = vmatpush1.bf16.msra.mxu0 %v616
    %652 = vmatprep.subr.bf16.mxu0 0
    %653 = vmatpush1.bf16.msra.mxu0 %v617
    %654 = vmatprep.subr.bf16.mxu0 0
    %655 = vmatpush1.bf16.msra.mxu0 %v618
    %656 = vmatprep.subr.bf16.mxu0 0
    %657 = vmatpush1.bf16.msra.mxu0 %v619
    %658 = vmatprep.subr.bf16.mxu0 0
    %659 = vmatpush1.bf16.msra.mxu0 %v620
    %660 = vmatprep.subr.bf16.mxu0 0
    %661 = vmatpush1.bf16.msra.mxu0 %v621
    %662 = vmatprep.subr.bf16.mxu0 0
    %663 = vmatpush1.bf16.msra.mxu0 %v622
    %664 = vmatprep.subr.bf16.mxu0 0
    %665 = vmatpush1.bf16.msra.mxu0 %v623
    %666 = vmatprep.subr.bf16.mxu0 0
    %667 = vmatpush1.bf16.msra.mxu0 %v624
    %668 = vmatprep.subr.bf16.mxu0 0
    %669 = vmatpush1.bf16.msra.mxu0 %v625
    %670 = vmatprep.subr.bf16.mxu0 0
    %671 = vmatpush1.bf16.msra.mxu0 %v626
    %672 = vmatprep.subr.bf16.mxu0 0
    %673 = vmatpush1.bf16.msra.mxu0 %v627
    %674 = vmatprep.subr.bf16.mxu0 0
    %675 = vmatpush1.bf16.msra.mxu0 %v628
    %676 = vmatprep.subr.bf16.mxu0 0
    %677 = vmatpush1.bf16.msra.mxu0 %v629
    %678 = vmatprep.mubr.bf16.mxu0 %v515
    %679 = vmatmul.mubr.bf16.gmra.mrb[0].mxu0 %v514
    %v680 = vpop.f32.mrb[0].mxu0
    %v681 = vadd.f32 0.0, %v680
    %v682 = vpop.f32.mrb[0].mxu0
    %v683 = vpop.f32.mrb[0].mxu0
    %v684 = vadd.f32 0.0, %v683
    %v685 = vpop.f32.mrb[0].mxu0
    %686 = vmatprep.mubr.bf16.mxu0 %v517
    %687 = vmatmul.mubr.bf16.gmra.mrb[0].mxu0 %v516
    %v688 = vpop.f32.mrb[0].mxu0
    %v689 = vadd.f32 0.0, %v688
    %v690 = vpop.f32.mrb[0].mxu0
    %v691 = vpop.f32.mrb[0].mxu0
    %v692 = vadd.f32 0.0, %v691
    %v693 = vpop.f32.mrb[0].mxu0
    %694 = vdwg.mxu0
    %v695 = vadd.f32 %v510, %v681
    %v696 = vadd.f32 %v511, %v684
    %v697 = vadd.f32 %v512, %v689
    %v698 = vadd.f32 %v513, %v692
    %699 = vst [vmem:[#allocation3] sm:$0xff] %v695
    %700 = vst [vmem:[#allocation3 + $0x8] sm:$0xff] %v696
    %701 = vst [vmem:[#allocation3 + $0x10] sm:$0xff] %v697
    %702 = vst [vmem:[#allocation3 + $0x18] sm:$0xff] %v698
    // Predicated region
    $region46: #{tpu_custom_call.1} parent=1 // pred_check
      %p703 = pneg %p69
    $region47: #{tpu_custom_call.1} parent=1 // pred_check_branch
      %705 = sbr.rel (%p703) target = $region49
    $region48: #{tpu_custom_call.1} parent=1 // pred_region
      %v706 = vld [vmem:[#allocation3] sm:$0xff]
      %v707 = vld [vmem:[#allocation3 + $0x8] sm:$0xff]
      %v708 = vld [vmem:[#allocation3 + $0x10] sm:$0xff]
      %v709 = vld [vmem:[#allocation3 + $0x18] sm:$0xff]
      %v710 = vld [vmem:[%s6] sm:$0x1]
      %v712 = vlaneseq
      %v713 = vshrl.u32 %v712, 7
      %v714 = vsub.s32 0, %v713
      %v715 = vrot.slane %v710, %v714
      %v717 = vadd.f32 %v706, %v715
      %v718 = vadd.f32 %v707, %v715
      %v719 = vadd.f32 %v708, %v715
      %v720 = vadd.f32 %v709, %v715
      %721 = vst [vmem:[#allocation10] sm:$0xff] %v717
      %722 = vst [vmem:[#allocation10 + $0x8] sm:$0xff] %v718
      %723 = vst [vmem:[#allocation10 + $0x10] sm:$0xff] %v719
      %724 = vst [vmem:[#allocation10 + $0x18] sm:$0xff] %v720
    $region49: #{tpu_custom_call.1} parent=1 // pred_fallthru
      _
    // Predicated region
    $region50: #{tpu_custom_call.1} parent=1 // pred_check
      _
    $region51: #{tpu_custom_call.1} parent=1 // pred_check_branch
      %726 = sbr.rel (0) target = $region53
    $region52: #{tpu_custom_call.1} parent=1 // pred_region
      %s728 = ssub.s32 512, 512
      %729 = vsyncadd [#allocation6], %s728
      %s730 = sshll.u32 [#allocation10], 4
      %s731 = int_to_ptr.vmem [resolvable:$true] %s730
      %736 = dma.vmem_to_hbm [thread:$0]  %s731, 512, %s7, [#allocation6], 128, 128, 8
    $region53: #{tpu_custom_call.1} parent=1 // pred_fallthru
      _
    // Predicated region
    $region54: #{tpu_custom_call.1} parent=1 // pred_check
      _
    $region55: #{tpu_custom_call.1} parent=1 // pred_check_branch
      %738 = sbr.rel (0) target = $region57
    $region56: #{tpu_custom_call.1} parent=1 // pred_region
      %739 = dma.done [#allocation6], 512
    $region57: #{tpu_custom_call.1} parent=1 // pred_fallthru
      _
    %740 = vsyncpa [#allocation5], 1
    %741 = vsyncpa [#allocation8], 1
    %742 = vsyncpa [#allocation6], 1

</llo_original>
